<compile_context>
chip_gen: v6e
topology: v6e:2x2x1
jax: 0.10.0
libtpu: 0.0.40
codegen_flags: <defaults>
</compile_context>

<pallas_src>
import jax
import jax.numpy as jnp
from jax.experimental import pallas as pl
from jax.experimental.pallas import tpu as pltpu


# --------------------------- Pallas kernel -------------------------------- #
def _make_kernel(L, K):
    pad = K // 2
    offsets = [k - pad for k in range(K)]        # tap k reads x[l + offsets[k]]

    def kernel(x_ref, t_ref, w1_ref, b1_ref, w2_ref, b2_ref, o_ref,
               xtaps_ref, htaps_ref):
        nbl = x_ref.shape[-1]                     # Nb * L (lane axis)

        # Position of every lane within its own sample (samples are
        # concatenated along the lane axis).  Built ONCE, reused by both convs.
        lane = jax.lax.broadcasted_iota(jnp.int32, (1, nbl), 1)
        if (L & (L - 1)) == 0:
            pos = jax.lax.bitwise_and(lane, L - 1)   # L is a power of two
        else:
            pos = lane % L
        masks = {d: (pos + d >= 0) & (pos + d < L) for d in offsets if d != 0}

        def im2col(a, taps_ref):
            # Stack the K shifted copies of `a` (C, Nb*L) into (K*C, Nb*L)
            # so the whole conv becomes ONE dot with contraction K*C.
            c = a.shape[0]
            for k, d in enumerate(offsets):
                if d == 0:
                    tap = a
                else:
                    # tap[:, l] = a[:, l + d], zero outside each sample.
                    rolled = pltpu.roll(a, shift=(-d) % nbl, axis=1)
                    tap = jnp.where(masks[d], rolled, 0.0)
                taps_ref[k * c:(k + 1) * c, :] = tap
            return taps_ref[...]

        x = x_ref[...]                                          # (C_in, Nb*L)

        # ---- in_conv (+ folded eval BatchNorm): (mid, K*C_in)@(K*C_in, Nb*L)
        h = jnp.dot(w1_ref[...], im2col(x, xtaps_ref),
                    preferred_element_type=jnp.float32) + b1_ref[...]

        # ---- LeakyReLU(0.1); Dropout(0.1) is identity in eval mode ----
        h = jnp.where(h > 0, h, 0.1 * h)

        # ---- time embedding (projection hoisted out; already L-broadcast) --
        h = h + t_ref[...]

        # ---- out_conv: (C_out, K*mid) @ (K*mid, Nb*L) ----
        o = jnp.dot(w2_ref[...], im2col(h, htaps_ref),
                    preferred_element_type=jnp.float32) + b2_ref[...]
        o_ref[...] = o.astype(o_ref.dtype)

    return kernel


# ------------------------------ wrapper ------------------------------------ #
def conv_block(x, time_embed, params, *, block_batch=4):
    """x: (N, C_in, L) f32; time_embed: (N, E) f32  ->  (N, C_out, L) f32."""
    w1, b1, bn_scale, bn_shift, wt, bt, w2, b2 = params
    N, C_in, L = x.shape
    mid, _, K = w1.shape
    C_out = w2.shape[0]

    nb = min(block_batch, N)                  # samples per grid step
    n_pad = (-N) % nb
    Np = N + n_pad
    nbl = nb * L

    # ---------- layout plumbing (tiny XLA ops, outside the kernel) ----------
    xp = jnp.pad(x, ((0, n_pad), (0, 0), (0, 0))) if n_pad else x
    x_flat = jnp.transpose(xp, (1, 0, 2)).reshape(C_in, Np * L)   # lane-dense

    # Hoisted time-embedding projection (Linear bias folded here), broadcast
    # over L so the kernel only adds it.
    t = time_embed @ wt.T + bt.reshape(1, mid)                    # (N, mid)
    tp = jnp.pad(t, ((0, n_pad), (0, 0))) if n_pad else t
    t_slab = jnp.broadcast_to(tp.T[:, :, None],
                              (mid, Np, L)).reshape(mid, Np * L)

    # Fold eval-mode BatchNorm into conv1 (exact: eval BN is per-channel affine).
    w1f = w1 * bn_scale[:, :, None]                               # (mid,C_in,K)
    b1f = b1 * bn_scale + bn_shift                                # (mid, 1)

    # Lane-dense weights: (co, ci, k) -> (co, k*C + ci), matching the im2col
    # row order built inside the kernel (K off the lane axis).
    w1_r = jnp.transpose(w1f, (0, 2, 1)).reshape(mid, K * C_in)
    w2_r = jnp.transpose(w2, (0, 2, 1)).reshape(C_out, K * mid)

    out_flat = pl.pallas_call(
        _make_kernel(L, K),
        out_shape=jax.ShapeDtypeStruct((C_out, Np * L), x.dtype),
        grid_spec=pltpu.PrefetchScalarGridSpec(
            num_scalar_prefetch=0,
            grid=(Np // nb,),
            in_specs=[
                pl.BlockSpec((C_in, nbl), lambda i: (0, i)),       # x slab
                pl.BlockSpec((mid, nbl), lambda i: (0, i)),        # time-embed
                pl.BlockSpec((mid, K * C_in), lambda i: (0, 0)),   # w1 (BN folded)
                pl.BlockSpec((mid, 1), lambda i: (0, 0)),          # b1 (BN folded)
                pl.BlockSpec((C_out, K * mid), lambda i: (0, 0)),  # w2
                pl.BlockSpec((C_out, 1), lambda i: (0, 0)),        # b2
            ],
            out_specs=pl.BlockSpec((C_out, nbl), lambda i: (0, i)),
            scratch_shapes=[
                pltpu.VMEM((K * C_in, nbl), jnp.float32),          # x im2col
                pltpu.VMEM((K * mid, nbl), jnp.float32),           # h im2col
            ],
        ),
        compiler_params=pltpu.CompilerParams(
            dimension_semantics=("parallel",)),
    )(x_flat, t_slab, w1_r, b1f, w2_r, b2)

    out = out_flat[:, :N * L].reshape(C_out, N, L)
    return jnp.transpose(out, (1, 0, 2))


# ----------------------- pure-JAX reference -------------------------------- #
def _ref_conv1d_same(x, w, b):
    # x: (N, Cin, L), w: (Cout, Cin, K), b: (Cout,)
    N, Cin, L = x.shape
    K = w.shape[2]
    pad = K // 2
    xp = jnp.pad(x, ((0, 0), (0, 0), (pad, pad)))
    out = jnp.zeros((N, w.shape[0], L), jnp.float32)
    for k in range(K):
        out = out + jnp.einsum('oi,nil->nol', w[:, :, k], xp[:, :, k:k + L])
    return out + b[None, :, None]


def conv_block_ref(x, time_embed, params):
    w1, b1, bn_scale, bn_shift, wt, bt, w2, b2 = params
    h = _ref_conv1d_same(x, w1, b1[:, 0])
    h = h * bn_scale[None, :, :] + bn_shift[None, :, :]
    h = jnp.where(h > 0, h, 0.1 * h)
    t = time_embed @ wt.T + bt[:, 0][None, :]
    h = h + t[:, :, None]
    return _ref_conv1d_same(h, w2, b2[:, 0])


# --------------------------- parameter builder ------------------------------ #
def make_params(key, c_in, mid, c_out, e, k):
    ks = jax.random.split(key, 10)
    fan1 = c_in * k
    w1 = jax.random.normal(ks[0], (mid, c_in, k), jnp.float32) * jnp.sqrt(2.0 / fan1)
    b1 = (jax.random.uniform(ks[1], (mid,), minval=-1.0, maxval=1.0)
          / jnp.sqrt(fan1)).reshape(mid, 1).astype(jnp.float32)

    # Eval-mode BatchNorm1d as a per-channel affine (random "trained" stats so
    # the weight fold is actually exercised).
    eps = 1e-5
    gamma = 1.0 + 0.1 * jax.random.normal(ks[2], (mid,), jnp.float32)
    beta = 0.1 * jax.random.normal(ks[3], (mid,), jnp.float32)
    r_mean = 0.1 * jax.random.normal(ks[4], (mid,), jnp.float32)
    r_var = jax.random.uniform(ks[5], (mid,), minval=0.5, maxval=1.5)
    inv_std = gamma / jnp.sqrt(r_var + eps)
    bn_scale = inv_std.reshape(mid, 1).astype(jnp.float32)
    bn_shift = (beta - r_mean * inv_std).reshape(mid, 1).astype(jnp.float32)

    # Linear(E -> mid): PyTorch weight layout (out_features, in_features).
    wt = jax.random.normal(ks[6], (mid, e), jnp.float32) / jnp.sqrt(e)
    bt = (jax.random.uniform(ks[7], (mid,), minval=-1.0, maxval=1.0)
          / jnp.sqrt(e)).reshape(mid, 1).astype(jnp.float32)

    fan2 = mid * k
    w2 = jax.random.normal(ks[8], (c_out, mid, k), jnp.float32) * jnp.sqrt(2.0 / fan2)
    b2 = (jax.random.uniform(ks[9], (c_out,), minval=-1.0, maxval=1.0)
          / jnp.sqrt(fan2)).reshape(c_out, 1).astype(jnp.float32)
    return (w1, b1, bn_scale, bn_shift, wt, bt, w2, b2)


# ---------------------------------- main ------------------------------------ #
if __name__ == "__main__":
    key = jax.random.PRNGKey(0)
    conv_block_jit = jax.jit(conv_block, static_argnames=("block_batch",))

    configs = [
        # (N, C_in, mid, C_out, L, E)
        (8, 1, 8, 1, 128, 32),   # module defaults (1-coordinate samples)
        (6, 3, 8, 3, 128, 32),   # 3-coordinate samples; exercises batch padding
    ]
    for idx, (N, C_in, mid, C_out, L, E) in enumerate(configs):
        kp, kx, kt, key = jax.random.split(key, 4)
        params = make_params(kp, C_in, mid, C_out, E, k=3)
        x = jax.random.normal(kx, (N, C_in, L), jnp.float32)
        time_embed = jax.random.normal(kt, (N, E), jnp.float32)

        out = conv_block_jit(x, time_embed, params, block_batch=4)
        out = jax.block_until_ready(out)

        ref = conv_block_ref(x, time_embed, params)
        assert out.shape == (N, C_out, L)
        err = jnp.max(jnp.abs(out - ref))
        assert jnp.allclose(out, ref, atol=1e-4, rtol=1e-4), \
            f"config {idx}: max abs err {err}"

    print("KERNEL_OK")
</pallas_src>

<mosaic_0001>
module attributes {stable_mosaic.version = 11 : i64} {
  func.func @kernel(%arg0: i32, %arg1: memref<1x512xf32, #tpu.memory_space<vmem>>, %arg2: memref<8x512xf32, #tpu.memory_space<vmem>>, %arg3: memref<8x3xf32, #tpu.memory_space<vmem>>, %arg4: memref<8x1xf32, #tpu.memory_space<vmem>>, %arg5: memref<1x24xf32, #tpu.memory_space<vmem>>, %arg6: memref<1x1xf32, #tpu.memory_space<vmem>>, %arg7: memref<1x512xf32, #tpu.memory_space<vmem>>, %arg8: memref<3x512xf32, #tpu.memory_space<vmem>>, %arg9: memref<24x512xf32, #tpu.memory_space<vmem>>) attributes {dimension_semantics = [#tpu.dimension_semantics<parallel>], iteration_bounds = array<i64: 2>, scalar_prefetch = 0 : i64, scratch_operands = 2 : i64, tpu.core_type = #tpu.core_type<tc>, window_params = [{transform_indices = @transform_0, window_bounds = array<i64: 1, 512>}, {transform_indices = @transform_1, window_bounds = array<i64: 8, 512>}, {pipeline_mode = #tpu.pipeline_mode<synchronous>, transform_indices = @transform_2, window_bounds = array<i64: 8, 3>}, {pipeline_mode = #tpu.pipeline_mode<synchronous>, transform_indices = @transform_3, window_bounds = array<i64: 8, 1>}, {pipeline_mode = #tpu.pipeline_mode<synchronous>, transform_indices = @transform_4, window_bounds = array<i64: 1, 24>}, {pipeline_mode = #tpu.pipeline_mode<synchronous>, transform_indices = @transform_5, window_bounds = array<i64: 1, 1>}, {transform_indices = @transform_6, window_bounds = array<i64: 1, 512>}]} {
    %0 = tpu.iota {dimensions = array<i32: 1>} : vector<1x512xi32>
    %c127_i32 = arith.constant 127 : i32
    %1 = vector.broadcast %c127_i32 : i32 to vector<1x512xi32>
    %2 = arith.andi %0, %1 : vector<1x512xi32>
    %c-1_i32 = arith.constant -1 : i32
    %3 = vector.broadcast %c-1_i32 : i32 to vector<1x512xi32>
    %4 = arith.addi %2, %3 : vector<1x512xi32>
    %c0_i32 = arith.constant 0 : i32
    %5 = vector.broadcast %c0_i32 : i32 to vector<1x512xi32>
    %6 = arith.cmpi sge, %4, %5 : vector<1x512xi32>
    %c-1_i32_0 = arith.constant -1 : i32
    %7 = vector.broadcast %c-1_i32_0 : i32 to vector<1x512xi32>
    %8 = arith.addi %2, %7 : vector<1x512xi32>
    %c128_i32 = arith.constant 128 : i32
    %9 = vector.broadcast %c128_i32 : i32 to vector<1x512xi32>
    %10 = arith.cmpi slt, %8, %9 : vector<1x512xi32>
    %11 = arith.andi %6, %10 : vector<1x512xi1>
    %c1_i32 = arith.constant 1 : i32
    %12 = vector.broadcast %c1_i32 : i32 to vector<1x512xi32>
    %13 = arith.addi %2, %12 : vector<1x512xi32>
    %c0_i32_1 = arith.constant 0 : i32
    %14 = vector.broadcast %c0_i32_1 : i32 to vector<1x512xi32>
    %15 = arith.cmpi sge, %13, %14 : vector<1x512xi32>
    %c1_i32_2 = arith.constant 1 : i32
    %16 = vector.broadcast %c1_i32_2 : i32 to vector<1x512xi32>
    %17 = arith.addi %2, %16 : vector<1x512xi32>
    %c128_i32_3 = arith.constant 128 : i32
    %18 = vector.broadcast %c128_i32_3 : i32 to vector<1x512xi32>
    %19 = arith.cmpi slt, %17, %18 : vector<1x512xi32>
    %20 = arith.andi %15, %19 : vector<1x512xi1>
    %c0 = arith.constant 0 : index
    %c0_4 = arith.constant 0 : index
    %21 = vector.load %arg1[%c0, %c0_4] : memref<1x512xf32, #tpu.memory_space<vmem>>, vector<1x512xf32>
    %c0_5 = arith.constant 0 : index
    %c0_6 = arith.constant 0 : index
    %22 = vector.load %arg3[%c0_5, %c0_6] : memref<8x3xf32, #tpu.memory_space<vmem>>, vector<8x3xf32>
    %c1_i32_7 = arith.constant 1 : i32
    %23 = tpu.dynamic_rotate %21 by %c1_i32_7 dim 1 : vector<1x512xf32>, i32 -> vector<1x512xf32>
    %cst = arith.constant 0.000000e+00 : f32
    %24 = vector.broadcast %cst : f32 to vector<1x512xf32>
    %25 = arith.select %11, %23, %24 : vector<1x512xi1>, vector<1x512xf32>
    %c0_8 = arith.constant 0 : index
    %c0_9 = arith.constant 0 : index
    %26 = vector.load %arg8[%c0_8, %c0_9] : memref<3x512xf32, #tpu.memory_space<vmem>>, vector<1x512xf32>
    tpu.vector_store %arg8[%c0_8, %c0_9], %25 {strides = array<i32>} : memref<3x512xf32, #tpu.memory_space<vmem>>, vector<1x512xf32>,
    %c1 = arith.constant 1 : index
    %c0_10 = arith.constant 0 : index
    %27 = vector.load %arg8[%c1, %c0_10] : memref<3x512xf32, #tpu.memory_space<vmem>>, vector<1x512xf32>
    tpu.vector_store %arg8[%c1, %c0_10], %21 {strides = array<i32>} : memref<3x512xf32, #tpu.memory_space<vmem>>, vector<1x512xf32>,
    %c511_i32 = arith.constant 511 : i32
    %28 = tpu.dynamic_rotate %21 by %c511_i32 dim 1 : vector<1x512xf32>, i32 -> vector<1x512xf32>
    %cst_11 = arith.constant 0.000000e+00 : f32
    %29 = vector.broadcast %cst_11 : f32 to vector<1x512xf32>
    %30 = arith.select %20, %28, %29 : vector<1x512xi1>, vector<1x512xf32>
    %c2 = arith.constant 2 : index
    %c0_12 = arith.constant 0 : index
    %31 = vector.load %arg8[%c2, %c0_12] : memref<3x512xf32, #tpu.memory_space<vmem>>, vector<1x512xf32>
    tpu.vector_store %arg8[%c2, %c0_12], %30 {strides = array<i32>} : memref<3x512xf32, #tpu.memory_space<vmem>>, vector<1x512xf32>,
    %c0_13 = arith.constant 0 : index
    %c0_14 = arith.constant 0 : index
    %32 = vector.load %arg8[%c0_13, %c0_14] : memref<3x512xf32, #tpu.memory_space<vmem>>, vector<3x512xf32>
    %cst_15 = arith.constant dense<0.000000e+00> : vector<8x512xf32>
    %33 = tpu.matmul %22, %32, %cst_15 {dimension_numbers = #tpu.dot_dimension_numbers<[1], [0], [0], [1], [0, 0, 1, 1], [], []>} : vector<8x3xf32>, vector<3x512xf32>, vector<8x512xf32> -> vector<8x512xf32>
    %c0_16 = arith.constant 0 : index
    %c0_17 = arith.constant 0 : index
    %34 = vector.load %arg4[%c0_16, %c0_17] : memref<8x1xf32, #tpu.memory_space<vmem>>, vector<8x1xf32>
    %35 = vector.broadcast %34 : vector<8x1xf32> to vector<8x512xf32>
    %36 = arith.addf %33, %35 : vector<8x512xf32>
    %cst_18 = arith.constant 0.000000e+00 : f32
    %37 = vector.broadcast %cst_18 : f32 to vector<8x512xf32>
    %38 = arith.cmpf ogt, %36, %37 : vector<8x512xf32>
    %cst_19 = arith.constant 1.000000e-01 : f32
    %39 = vector.broadcast %cst_19 : f32 to vector<8x512xf32>
    %40 = arith.mulf %39, %36 : vector<8x512xf32>
    %41 = arith.select %38, %36, %40 : vector<8x512xi1>, vector<8x512xf32>
    %c0_20 = arith.constant 0 : index
    %c0_21 = arith.constant 0 : index
    %42 = vector.load %arg2[%c0_20, %c0_21] : memref<8x512xf32, #tpu.memory_space<vmem>>, vector<8x512xf32>
    %43 = arith.addf %41, %42 : vector<8x512xf32>
    %c0_22 = arith.constant 0 : index
    %c0_23 = arith.constant 0 : index
    %44 = vector.load %arg5[%c0_22, %c0_23] : memref<1x24xf32, #tpu.memory_space<vmem>>, vector<1x24xf32>
    %c1_i32_24 = arith.constant 1 : i32
    %45 = tpu.dynamic_rotate %43 by %c1_i32_24 dim 1 : vector<8x512xf32>, i32 -> vector<8x512xf32>
    %cst_25 = arith.constant 0.000000e+00 : f32
    %46 = vector.shape_cast %11 : vector<1x512xi1> to vector<1x512xi1>
    %47 = vector.broadcast %46 : vector<1x512xi1> to vector<8x512xi1>
    %48 = vector.broadcast %cst_25 : f32 to vector<8x512xf32>
    %49 = arith.select %47, %45, %48 : vector<8x512xi1>, vector<8x512xf32>
    %c0_26 = arith.constant 0 : index
    %c0_27 = arith.constant 0 : index
    %50 = vector.load %arg9[%c0_26, %c0_27] : memref<24x512xf32, #tpu.memory_space<vmem>>, vector<8x512xf32>
    tpu.vector_store %arg9[%c0_26, %c0_27], %49 {strides = array<i32>} : memref<24x512xf32, #tpu.memory_space<vmem>>, vector<8x512xf32>,
    %c8 = arith.constant 8 : index
    %c0_28 = arith.constant 0 : index
    %51 = vector.load %arg9[%c8, %c0_28] : memref<24x512xf32, #tpu.memory_space<vmem>>, vector<8x512xf32>
    tpu.vector_store %arg9[%c8, %c0_28], %43 {strides = array<i32>} : memref<24x512xf32, #tpu.memory_space<vmem>>, vector<8x512xf32>,
    %c511_i32_29 = arith.constant 511 : i32
    %52 = tpu.dynamic_rotate %43 by %c511_i32_29 dim 1 : vector<8x512xf32>, i32 -> vector<8x512xf32>
    %cst_30 = arith.constant 0.000000e+00 : f32
    %53 = vector.shape_cast %20 : vector<1x512xi1> to vector<1x512xi1>
    %54 = vector.broadcast %53 : vector<1x512xi1> to vector<8x512xi1>
    %55 = vector.broadcast %cst_30 : f32 to vector<8x512xf32>
    %56 = arith.select %54, %52, %55 : vector<8x512xi1>, vector<8x512xf32>
    %c16 = arith.constant 16 : index
    %c0_31 = arith.constant 0 : index
    %57 = vector.load %arg9[%c16, %c0_31] : memref<24x512xf32, #tpu.memory_space<vmem>>, vector<8x512xf32>
    tpu.vector_store %arg9[%c16, %c0_31], %56 {strides = array<i32>} : memref<24x512xf32, #tpu.memory_space<vmem>>, vector<8x512xf32>,
    %c0_32 = arith.constant 0 : index
    %c0_33 = arith.constant 0 : index
    %58 = vector.load %arg9[%c0_32, %c0_33] : memref<24x512xf32, #tpu.memory_space<vmem>>, vector<24x512xf32>
    %cst_34 = arith.constant dense<0.000000e+00> : vector<1x512xf32>
    %59 = tpu.matmul %44, %58, %cst_34 {dimension_numbers = #tpu.dot_dimension_numbers<[1], [0], [0], [1], [0, 0, 1, 1], [], []>} : vector<1x24xf32>, vector<24x512xf32>, vector<1x512xf32> -> vector<1x512xf32>
    %c0_35 = arith.constant 0 : index
    %c0_36 = arith.constant 0 : index
    %60 = vector.load %arg6[%c0_35, %c0_36] : memref<1x1xf32, #tpu.memory_space<vmem>>, vector<1x1xf32>
    %61 = vector.broadcast %60 : vector<1x1xf32> to vector<1x512xf32>
    %62 = arith.addf %59, %61 : vector<1x512xf32>
    %c0_37 = arith.constant 0 : index
    %c0_38 = arith.constant 0 : index
    %63 = vector.load %arg7[%c0_37, %c0_38] : memref<1x512xf32, #tpu.memory_space<vmem>>, vector<1x512xf32>
    tpu.vector_store %arg7[%c0_37, %c0_38], %62 {strides = array<i32>} : memref<1x512xf32, #tpu.memory_space<vmem>>, vector<1x512xf32>,
    return
  }
  func.func @transform_0(%arg0: i32) -> (i32, i32) {
    %c0_i32 = arith.constant 0 : i32
    %c0_i32_0 = arith.constant 0 : i32
    return %c0_i32, %arg0 : i32, i32
  }
  func.func @transform_1(%arg0: i32) -> (i32, i32) {
    %c0_i32 = arith.constant 0 : i32
    %c0_i32_0 = arith.constant 0 : i32
    return %c0_i32, %arg0 : i32, i32
  }
  func.func @transform_2(%arg0: i32) -> (i32, i32) {
    %c0_i32 = arith.constant 0 : i32
    %c0_i32_0 = arith.constant 0 : i32
    %c0_i32_1 = arith.constant 0 : i32
    return %c0_i32, %c0_i32_0 : i32, i32
  }
  func.func @transform_3(%arg0: i32) -> (i32, i32) {
    %c0_i32 = arith.constant 0 : i32
    %c0_i32_0 = arith.constant 0 : i32
    %c0_i32_1 = arith.constant 0 : i32
    return %c0_i32, %c0_i32_0 : i32, i32
  }
  func.func @transform_4(%arg0: i32) -> (i32, i32) {
    %c0_i32 = arith.constant 0 : i32
    %c0_i32_0 = arith.constant 0 : i32
    %c0_i32_1 = arith.constant 0 : i32
    return %c0_i32, %c0_i32_0 : i32, i32
  }
  func.func @transform_5(%arg0: i32) -> (i32, i32) {
    %c0_i32 = arith.constant 0 : i32
    %c0_i32_0 = arith.constant 0 : i32
    %c0_i32_1 = arith.constant 0 : i32
    return %c0_i32, %c0_i32_0 : i32, i32
  }
  func.func @transform_6(%arg0: i32) -> (i32, i32) {
    %c0_i32 = arith.constant 0 : i32
    %c0_i32_0 = arith.constant 0 : i32
    return %c0_i32, %arg0 : i32, i32
  }
}

</mosaic_0001>

<llo_original>
// kernel: conv_block.1
$region0: #{conv_block.1}
  #allocation0 [shape = 'u32[]', space=smem, size = 0x4, offset = 0x4, fixed_abs, tag = 'smem constant byte address 0x4 - core index']
  #allocation1 [shape = 'u32[144,128]{1,0:T(1,128)}', space=vmem, size = 0x12000, scoped, tag = 'internal scratch']
  #allocation2 [shape = 'f32[3,512]{1,0:T(4,128)}', space=vmem, size = 0x2000, scoped, tag = 'scratch operand']
  #allocation3 [shape = 'f32[24,512]{1,0:T(8,128)}', space=vmem, size = 0xc000, scoped, tag = 'scratch operand']
  #allocation4 [shape = 'f32[1,1]{1,0:T(1,128)S(1)}', space=vmem, size = 0x200, scoped, tag = 'scoped memory for conv_block.1']
  %s0 = inlined_call_operand.vmem [shape: f32[1,1024], index: 0, kind: input, shape index: {}]
  %s1 = inlined_call_operand.vmem [shape: f32[8,1024], index: 1, kind: input, shape index: {}]
  %s2 = inlined_call_operand.vmem [shape: f32[8,3], index: 2, kind: input, shape index: {}]
  %s3 = inlined_call_operand.vmem [shape: f32[8,1], index: 3, kind: input, shape index: {}]
  %s4 = inlined_call_operand.vmem [shape: f32[1,24], index: 4, kind: input, shape index: {}]
  %s5 = inlined_call_operand.<no memory space> [shape: f32[1,1], index: 5, kind: input, shape index: {}]
  %s6 = inlined_call_operand.hbm [shape: f32[1,1024], index: 6, kind: output, shape index: {}]
  %s7 = sld [smem:[#allocation0]]
  $region57: #{conv_block.1} parent=0
    _
  %s9 = ssub.s32 1, %s7
  %s10 = scalar_select 0, %s9, %s7
  %v11 = vstv %s5
  %12 = vst [vmem:[#allocation4] sm:$0x1] %v11
  $region1: #{conv_block.1} parent=0
    #allocation5 [shape = 'u8[4096]{0}', space=vmem, size = 0x1000, scoped, tag = 'output window, operand 0']
    #allocation6 [shape = 's32[2]{0}', space=sflag, size = 0x8, scoped, tag = 'scoped memory for conv_block.1']
    %13 = vsyncpa [#allocation6], 0
    %s14 = scalar_lea.sflag [#allocation6], 1
    %15 = vsyncpa %s14, 0
    loop: start=0, step=1, limit=4
    $region2: #{conv_block.1} parent=1 // loop_pre_header
      _
    $region3: #{conv_block.1} parent=1 // loop_header
      %s17 = sphi 0, %s21
      %p18 = scmp.ge.s32.totalorder %s17, 4
      %s27 = sphi 0, %s29
      %s30 = sphi 0, %s27
      %s31 = sphi 0, %s30
      %s47 = sphi 0, %s31
      %s53 = sphi 0, %s55
      %s56 = sphi 0, %s53
      %s57 = sphi 0, %s56
      %s73 = sphi 0, %s57
      %s77 = sphi 0, %s77
      %s79 = sphi 0, %s77
      %s80 = sphi 0, %s79
      %s94 = sphi 0, %s80
      %s98 = sphi 0, %s98
      %s100 = sphi 0, %s98
      %s101 = sphi 0, %s100
      %s115 = sphi 0, %s101
      %s119 = sphi 0, %s119
      %s121 = sphi 0, %s119
      %s122 = sphi 0, %s121
      %s136 = sphi 0, %s122
      %s140 = sphi 0, %s140
      %s142 = sphi 0, %s140
      %s143 = sphi 0, %s142
      %s157 = sphi 0, %s143
      %s163 = sphi 0, %s165
      %s166 = sphi 0, %s163
      %s167 = sphi 0, %s166
      %s183 = sphi 0, %s167
    $region4: #{conv_block.1} parent=1 // loop_header_branch
      %20 = sbr.rel (%p18) target = $region8
    $region5: #{conv_block.1} parent=1 // loop_body
      %s22 = ssub.s32 %s17, 1
      %s23 = ssub.s32 %s17, 2
      %s24 = sadd.s32 %s17, 1
      %s25 = ssub.s32 %s17, %s24
      %p26 = scmp.eq.s32.totalorder %s25, 0
      %s28 = sadd.s32 %s27, 1
      %s29 = scalar_select %p26, %s27, %s28
      %p32 = pneg %p26
      %p33 = scmp.eq.s32.totalorder %s17, 1
      %p34 = por %p32, %p33
      %p35 = scmp.ne.s32.totalorder %s27, %s30
      %p36 = scmp.eq.s32.totalorder %s17, 0
      %p37 = por %p35, %p36
      %p38 = scmp.ne.s32.totalorder %s27, %s30
      %p39 = scmp.eq.s32.totalorder %s22, 1
      %p40 = por %p38, %p39
      %p41 = scmp.ne.s32.totalorder %s30, %s31
      %p42 = scmp.eq.s32.totalorder %s22, 0
      %p43 = por %p41, %p42
      %p44 = scmp.ne.s32.totalorder %s30, %s31
      %p45 = scmp.eq.s32.totalorder %s23, 1
      %p46 = por %p44, %p45
      %p48 = scmp.ne.s32.totalorder %s31, %s47
      %p49 = scmp.eq.s32.totalorder %s23, 0
      %p50 = por %p48, %p49
      %s51 = ssub.s32 %s17, %s24
      %p52 = scmp.eq.s32.totalorder %s51, 0
      %s54 = sadd.s32 %s53, 1
      %s55 = scalar_select %p52, %s53, %s54
      %p58 = pneg %p52
      %p59 = scmp.eq.s32.totalorder %s17, 1
      %p60 = por %p58, %p59
      %p61 = scmp.ne.s32.totalorder %s53, %s56
      %p62 = scmp.eq.s32.totalorder %s17, 0
      %p63 = por %p61, %p62
      %p64 = scmp.ne.s32.totalorder %s53, %s56
      %p65 = scmp.eq.s32.totalorder %s22, 1
      %p66 = por %p64, %p65
      %p67 = scmp.ne.s32.totalorder %s56, %s57
      %p68 = scmp.eq.s32.totalorder %s22, 0
      %p69 = por %p67, %p68
      %p70 = scmp.ne.s32.totalorder %s56, %s57
      %p71 = scmp.eq.s32.totalorder %s23, 1
      %p72 = por %p70, %p71
      %p74 = scmp.ne.s32.totalorder %s57, %s73
      %p75 = scmp.eq.s32.totalorder %s23, 0
      %p76 = por %p74, %p75
      %s78 = sadd.s32 %s77, 1
      %p81 = scmp.eq.s32.totalorder %s17, 1
      %p82 = scmp.ne.s32.totalorder %s77, %s79
      %p83 = scmp.eq.s32.totalorder %s17, 0
      %p84 = por %p82, %p83
      %p85 = scmp.ne.s32.totalorder %s77, %s79
      %p86 = scmp.eq.s32.totalorder %s22, 1
      %p87 = por %p85, %p86
      %p88 = scmp.ne.s32.totalorder %s79, %s80
      %p89 = scmp.eq.s32.totalorder %s22, 0
      %p90 = por %p88, %p89
      %p91 = scmp.ne.s32.totalorder %s79, %s80
      %p92 = scmp.eq.s32.totalorder %s23, 1
      %p93 = por %p91, %p92
      %p95 = scmp.ne.s32.totalorder %s80, %s94
      %p96 = scmp.eq.s32.totalorder %s23, 0
      %p97 = por %p95, %p96
      %s99 = sadd.s32 %s98, 1
      %p102 = scmp.eq.s32.totalorder %s17, 1
      %p103 = scmp.ne.s32.totalorder %s98, %s100
      %p104 = scmp.eq.s32.totalorder %s17, 0
      %p105 = por %p103, %p104
      %p106 = scmp.ne.s32.totalorder %s98, %s100
      %p107 = scmp.eq.s32.totalorder %s22, 1
      %p108 = por %p106, %p107
      %p109 = scmp.ne.s32.totalorder %s100, %s101
      %p110 = scmp.eq.s32.totalorder %s22, 0
      %p111 = por %p109, %p110
      %p112 = scmp.ne.s32.totalorder %s100, %s101
      %p113 = scmp.eq.s32.totalorder %s23, 1
      %p114 = por %p112, %p113
      %p116 = scmp.ne.s32.totalorder %s101, %s115
      %p117 = scmp.eq.s32.totalorder %s23, 0
      %p118 = por %p116, %p117
      %s120 = sadd.s32 %s119, 1
      %p123 = scmp.eq.s32.totalorder %s17, 1
      %p124 = scmp.ne.s32.totalorder %s119, %s121
      %p125 = scmp.eq.s32.totalorder %s17, 0
      %p126 = por %p124, %p125
      %p127 = scmp.ne.s32.totalorder %s119, %s121
      %p128 = scmp.eq.s32.totalorder %s22, 1
      %p129 = por %p127, %p128
      %p130 = scmp.ne.s32.totalorder %s121, %s122
      %p131 = scmp.eq.s32.totalorder %s22, 0
      %p132 = por %p130, %p131
      %p133 = scmp.ne.s32.totalorder %s121, %s122
      %p134 = scmp.eq.s32.totalorder %s23, 1
      %p135 = por %p133, %p134
      %p137 = scmp.ne.s32.totalorder %s122, %s136
      %p138 = scmp.eq.s32.totalorder %s23, 0
      %p139 = por %p137, %p138
      %s141 = sadd.s32 %s140, 1
      %p144 = scmp.eq.s32.totalorder %s17, 1
      %p145 = scmp.ne.s32.totalorder %s140, %s142
      %p146 = scmp.eq.s32.totalorder %s17, 0
      %p147 = por %p145, %p146
      %p148 = scmp.ne.s32.totalorder %s140, %s142
      %p149 = scmp.eq.s32.totalorder %s22, 1
      %p150 = por %p148, %p149
      %p151 = scmp.ne.s32.totalorder %s142, %s143
      %p152 = scmp.eq.s32.totalorder %s22, 0
      %p153 = por %p151, %p152
      %p154 = scmp.ne.s32.totalorder %s142, %s143
      %p155 = scmp.eq.s32.totalorder %s23, 1
      %p156 = por %p154, %p155
      %p158 = scmp.ne.s32.totalorder %s143, %s157
      %p159 = scmp.eq.s32.totalorder %s23, 0
      %p160 = por %p158, %p159
      %s161 = ssub.s32 %s17, %s24
      %p162 = scmp.eq.s32.totalorder %s161, 0
      %s164 = sadd.s32 %s163, 1
      %s165 = scalar_select %p162, %s163, %s164
      %p168 = pneg %p162
      %p169 = scmp.eq.s32.totalorder %s17, 1
      %p170 = por %p168, %p169
      %p171 = scmp.ne.s32.totalorder %s163, %s166
      %p172 = scmp.eq.s32.totalorder %s17, 0
      %p173 = por %p171, %p172
      %p174 = scmp.ne.s32.totalorder %s163, %s166
      %p175 = scmp.eq.s32.totalorder %s22, 1
      %p176 = por %p174, %p175
      %p177 = scmp.ne.s32.totalorder %s166, %s167
      %p178 = scmp.eq.s32.totalorder %s22, 0
      %p179 = por %p177, %p178
      %p180 = scmp.ne.s32.totalorder %s166, %s167
      %p181 = scmp.eq.s32.totalorder %s23, 1
      %p182 = por %p180, %p181
      %p184 = scmp.ne.s32.totalorder %s167, %s183
      %p185 = scmp.eq.s32.totalorder %s23, 0
      %p186 = por %p184, %p185
      %p187 = scmp.le.s32.totalorder 1, %s17
      %p188 = scmp.lt.s32.totalorder %s17, 3
      %p189 = pnand %p187, %p188
      %p190 = pneg %p189
      // Predicated region
      $region9: #{conv_block.1} parent=5 // pred_check
        _
      $region10: #{conv_block.1} parent=5 // pred_check_branch
        %192 = sbr.rel (%p189) target = $region12
      $region11: #{conv_block.1} parent=5 // pred_region
        %s193 = ssub.s32 %s17, 1
        // Predicated region
        $region13: #{conv_block.1} parent=11 // pred_check
          %p194 = pneg %p90
        $region14: #{conv_block.1} parent=11 // pred_check_branch
          %196 = sbr.rel (%p194) target = $region16
        $region15: #{conv_block.1} parent=11 // pred_region
          _
        $region16: #{conv_block.1} parent=11 // pred_fallthru
          _
        // Predicated region
        $region17: #{conv_block.1} parent=11 // pred_check
          %p197 = pneg %p111
        $region18: #{conv_block.1} parent=11 // pred_check_branch
          %199 = sbr.rel (%p197) target = $region20
        $region19: #{conv_block.1} parent=11 // pred_region
          _
        $region20: #{conv_block.1} parent=11 // pred_fallthru
          _
        // Predicated region
        $region21: #{conv_block.1} parent=11 // pred_check
          %p200 = pneg %p132
        $region22: #{conv_block.1} parent=11 // pred_check_branch
          %202 = sbr.rel (%p200) target = $region24
        $region23: #{conv_block.1} parent=11 // pred_region
          _
        $region24: #{conv_block.1} parent=11 // pred_fallthru
          _
        // Predicated region
        $region25: #{conv_block.1} parent=11 // pred_check
          %p203 = pneg %p153
        $region26: #{conv_block.1} parent=11 // pred_check_branch
          %205 = sbr.rel (%p203) target = $region28
        $region27: #{conv_block.1} parent=11 // pred_region
          _
        $region28: #{conv_block.1} parent=11 // pred_fallthru
          _
      $region12: #{conv_block.1} parent=5 // pred_fallthru
        _
      %p206 = scmp.lt.s32.totalorder %s17, 2
      // Predicated region
      $region29: #{conv_block.1} parent=5 // pred_check
        %p207 = pneg %p206
      $region30: #{conv_block.1} parent=5 // pred_check_branch
        %209 = sbr.rel (%p207) target = $region32
      $region31: #{conv_block.1} parent=5 // pred_region
        // Predicated region
        $region33: #{conv_block.1} parent=31 // pred_check
          %p210 = pneg %p37
        $region34: #{conv_block.1} parent=31 // pred_check_branch
          %212 = sbr.rel (%p210) target = $region36
        $region35: #{conv_block.1} parent=31 // pred_region
          %s213 = smul.u32 4, %s17
          %p214 = scmp.lt.s32.totalorder %s213, 7
          %s215 = scalar_select %p214, %s213, 7
          %s216 = scalar_lea.vmem %s0, %s215
          %s217 = smul.u32 4, %s17
        $region36: #{conv_block.1} parent=31 // pred_fallthru
          _
        // Predicated region
        $region37: #{conv_block.1} parent=31 // pred_check
          %p218 = pneg %p63
        $region38: #{conv_block.1} parent=31 // pred_check_branch
          %220 = sbr.rel (%p218) target = $region40
        $region39: #{conv_block.1} parent=31 // pred_region
          %s221 = smul.u32 4, %s17
          %p222 = scmp.lt.s32.totalorder %s221, 7
          %s223 = scalar_select %p222, %s221, 7
          %s224 = smul.addr %s223, 8
          %s225 = scalar_lea.vmem %s1, %s224
          %s226 = smul.u32 4, %s17
        $region40: #{conv_block.1} parent=31 // pred_fallthru
          _
      $region32: #{conv_block.1} parent=5 // pred_fallthru
        _
      %p227 = scmp.le.s32.totalorder 1, %s17
      %p228 = scmp.lt.s32.totalorder %s17, 3
      %p229 = pnand %p227, %p228
      %p230 = pneg %p229
      // Predicated region
      $region41: #{conv_block.1} parent=5 // pred_check
        _
      $region42: #{conv_block.1} parent=5 // pred_check_branch
        %232 = sbr.rel (%p229) target = $region44
      $region43: #{conv_block.1} parent=5 // pred_region
        %s233 = ssub.s32 %s17, 1
        %s234 = smul.u32 4, %s22
        %p235 = scmp.lt.s32.totalorder %s234, 7
        %s236 = scalar_select %p235, %s234, 7
        %s237 = scalar_lea.vmem %s0, %s236
        %p238 = pneg %p43
        %p239 = pneg %p40
        %s240 = smul.u32 4, %s22
        %p241 = scmp.lt.s32.totalorder %s240, 7
        %s242 = scalar_select %p241, %s240, 7
        %s243 = smul.addr %s242, 8
        %s244 = scalar_lea.vmem %s1, %s243
        %p245 = pneg %p69
        %p246 = pneg %p66
        %p247 = pneg %p90
        %p248 = pneg %p87
        %p249 = pneg %p111
        %p250 = pneg %p108
        %p251 = pneg %p132
        %p252 = pneg %p129
        %p253 = pneg %p153
        %p254 = pneg %p150
        %p255 = pneg %p179
        %p256 = pneg %p176
        %s257 = sand.u32 %s166, 1
        %s258 = scalar_lea.sflag [#allocation6], %s257
        %s259 = sand.u32 %s166, 1
        %s260 = smul.addr %s259, 4
        %s261 = scalar_lea.vmem [#allocation5], %s260
        %s262 = smul.u32 4, %s22
        %p263 = scmp.lt.s32.totalorder %s262, 7
        %s264 = scalar_select %p263, %s262, 7
        %s265 = scalar_lea.vmem %s0, %s264
        %s266 = smul.u32 4, %s22
        %s267 = smul.u32 4, %s22
        %p268 = scmp.lt.s32.totalorder %s267, 7
        %s269 = scalar_select %p268, %s267, 7
        %s270 = smul.addr %s269, 8
        %s271 = scalar_lea.vmem %s1, %s270
        %s272 = smul.u32 4, %s22
        %s273 = smul.u32 4, %s22
        %v274 = vlaneseq
        %v275 = vand.u32 %v274, 127
        %v276 = vadd.s32 %v275, 128
        %v277 = vadd.s32 %v275, 256
        %v278 = vadd.s32 %v275, 384
        %v279 = vand.u32 %v275, 127
        %v280 = vand.u32 %v276, 127
        %v281 = vand.u32 %v277, 127
        %v282 = vand.u32 %v278, 127
        %v283 = vadd.s32 %v279, 4294967295
        %v284 = vadd.s32 %v280, 4294967295
        %v285 = vadd.s32 %v281, 4294967295
        %v286 = vadd.s32 %v282, 4294967295
        %vm287 = vcmp.ge.s32.totalorder %v283, 0
        %vm288 = vcmp.ge.s32.totalorder %v284, 0
        %vm289 = vcmp.ge.s32.totalorder %v285, 0
        %vm290 = vcmp.ge.s32.totalorder %v286, 0
        %vm291 = vcmp.lt.s32.totalorder %v283, 128
        %vm292 = vcmp.lt.s32.totalorder %v284, 128
        %vm293 = vcmp.lt.s32.totalorder %v285, 128
        %vm294 = vcmp.lt.s32.totalorder %v286, 128
        %vm295 = vmand %vm287, %vm291
        %vm296 = vmand %vm288, %vm292
        %vm297 = vmand %vm289, %vm293
        %vm298 = vmand %vm290, %vm294
        %v299 = vadd.s32 %v279, 1
        %v300 = vadd.s32 %v280, 1
        %v301 = vadd.s32 %v281, 1
        %v302 = vadd.s32 %v282, 1
        %vm303 = vcmp.ge.s32.totalorder %v299, 0
        %vm304 = vcmp.ge.s32.totalorder %v300, 0
        %vm305 = vcmp.ge.s32.totalorder %v301, 0
        %vm306 = vcmp.ge.s32.totalorder %v302, 0
        %vm307 = vcmp.lt.s32.totalorder %v299, 128
        %vm308 = vcmp.lt.s32.totalorder %v300, 128
        %vm309 = vcmp.lt.s32.totalorder %v301, 128
        %vm310 = vcmp.lt.s32.totalorder %v302, 128
        %vm311 = vmand %vm303, %vm307
        %vm312 = vmand %vm304, %vm308
        %vm313 = vmand %vm305, %vm309
        %vm314 = vmand %vm306, %vm310
        %v315 = vld [vmem:[%s265] sm:$0xf]
        %v316 = vld [vmem:[%s2] sm:$0xff]
        %v318 = vlaneseq
        %v319 = vshrl.u32 %v318, 7
        %v320 = vsub.s32 0, %v319
        %v321 = vrot.slane %v315, %v320
        %v322 = vlaneseq
        %v323 = vshrl.u32 %v322, 7
        %v324 = vsub.s32 1, %v323
        %v325 = vrot.slane %v315, %v324
        %v326 = vlaneseq
        %v327 = vshrl.u32 %v326, 7
        %v328 = vsub.s32 2, %v327
        %v329 = vrot.slane %v315, %v328
        %v330 = vlaneseq
        %v331 = vshrl.u32 %v330, 7
        %v332 = vsub.s32 3, %v331
        %v333 = vrot.slane %v315, %v332
        %338 = vrot.lane.b32.xlu0 %v321, 1
        %v339 = vpop.permute.xlu0 %338
        %340 = vrot.lane.b32.xlu0 %v325, 1
        %v341 = vpop.permute.xlu0 %340
        %342 = vrot.lane.b32.xlu0 %v329, 1
        %v343 = vpop.permute.xlu0 %342
        %344 = vrot.lane.b32.xlu0 %v333, 1
        %v345 = vpop.permute.xlu0 %344
        %vm346 = vcmp.lt.s32.totalorder %v275, 1
        %v347 = vsel %vm346, %v343, %v345
        %v348 = vsel %vm346, %v341, %v343
        %v349 = vsel %vm346, %v339, %v341
        %v350 = vsel %vm346, %v345, %v339
        %v351 = vsel %vm295, %v350, 0.0
        %v352 = vsel %vm296, %v349, 0.0
        %v353 = vsel %vm297, %v348, 0.0
        %v354 = vsel %vm298, %v347, 0.0
        %v359 = vcombine.low %v351, %v352
        %v360 = vcombine.low %v353, %v354
        %v362 = vunpack.c.l.s4 1966171168
        %v363 = vunpack.c.0.s8 %v362
        %v364 = vlaneseq
        %v365 = vshrl.u32 %v364, 7
        %v366 = vsub.s32 %v363, %v365
        %v367 = vrot.slane %v359, %v366
        %v369 = vunpack.c.l.s4 1966171168
        %v370 = vunpack.c.0.s8 %v369
        %v371 = vlaneseq
        %v372 = vshrl.u32 %v371, 7
        %v373 = vsub.s32 %v370, %v372
        %v374 = vrot.slane %v360, %v373
        %v375 = vcombine.low %v367, %v374
        %v377 = vunpack.c.l.s4 1966171168
        %v378 = vunpack.c.0.s8 %v377
        %v379 = vlaneseq
        %v380 = vshrl.u32 %v379, 7
        %v381 = vsub.s32 %v378, %v380
        %v382 = vrot.slane %v375, %v381
        %v384 = vlaneseq
        %vm385 = vcmp.ge.s32.totalorder %v384, 0
        %vm386 = vcmp.lt.s32.totalorder %v384, 512
        %vm387 = vmand %vm385, %vm386
        %388 = vst.msk [vmem:[#allocation2] ss:$4 sm:$0xf] %vm387, %v382
        %s389 = scalar_lea.vmem [#allocation2], 1
        %390 = vst.msk [vmem:[%s389] ss:$4 sm:$0xf] %vm387, %v315
        %391 = vrot.lane.b32.xlu0 %v321, 127
        %v392 = vpop.permute.xlu0 %391
        %393 = vrot.lane.b32.xlu0 %v325, 127
        %v394 = vpop.permute.xlu0 %393
        %395 = vrot.lane.b32.xlu0 %v329, 127
        %v396 = vpop.permute.xlu0 %395
        %397 = vrot.lane.b32.xlu0 %v333, 127
        %v398 = vpop.permute.xlu0 %397
        %vm399 = vcmp.lt.s32.totalorder %v275, 127
        %v400 = vsel %vm399, %v396, %v398
        %v401 = vsel %vm399, %v394, %v396
        %v402 = vsel %vm399, %v392, %v394
        %v403 = vsel %vm399, %v398, %v392
        %v404 = vsel %vm311, %v402, 0.0
        %v405 = vsel %vm312, %v401, 0.0
        %v406 = vsel %vm313, %v400, 0.0
        %v407 = vsel %vm314, %v403, 0.0
        %v412 = vcombine.low %v404, %v405
        %v413 = vcombine.low %v406, %v407
        %v415 = vunpack.c.l.s4 1966171168
        %v416 = vunpack.c.0.s8 %v415
        %v417 = vlaneseq
        %v418 = vshrl.u32 %v417, 7
        %v419 = vsub.s32 %v416, %v418
        %v420 = vrot.slane %v412, %v419
        %v422 = vunpack.c.l.s4 1966171168
        %v423 = vunpack.c.0.s8 %v422
        %v424 = vlaneseq
        %v425 = vshrl.u32 %v424, 7
        %v426 = vsub.s32 %v423, %v425
        %v427 = vrot.slane %v413, %v426
        %v428 = vcombine.low %v420, %v427
        %v430 = vunpack.c.l.s4 1966171168
        %v431 = vunpack.c.0.s8 %v430
        %v432 = vlaneseq
        %v433 = vshrl.u32 %v432, 7
        %v434 = vsub.s32 %v431, %v433
        %v435 = vrot.slane %v428, %v434
        %s437 = scalar_lea.vmem [#allocation2], 2
        %438 = vst.msk [vmem:[%s437] ss:$4 sm:$0xf] %vm387, %v435
        %v439 = vld [vmem:[#allocation2] sm:$0x77]
        %v440 = vld [vmem:[#allocation2 + $0x8] sm:$0x77]
        %v441 = vld [vmem:[%s3] sm:$0xff]
        %443 = vset.pattern.permute.xlu0 0
        %444 = vperm.xlu0 %443, %v441
        %v445 = vpop.permute.xlu0 %444
        %v449 = vcombine.high %v439, %v439
        %v450 = vcombine.high %v440, %v440
        %vm451 = vcmask 23552
        %v453 = vsel %vm451, %v316, 0
        %vm455 = vcmask 1042432
        %v456 = vsel %vm455, %v439, 0
        %v458 = vsel %vm455, %v449, 0
        %v460 = vsel %vm455, %v440, 0
        %v462 = vsel %vm455, %v450, 0
        %464 = vmatprep.subr.mxu0 0.0
        %465 = vmatpush1.msra.mxu0 0.0
        %466 = vmatprep.subr.mxu0 0.0
        %467 = vmatpush1.msra.mxu0 0.0
        %468 = vmatprep.subr.mxu0 0.0
        %469 = vmatpush1.msra.mxu0 0.0
        %470 = vmatprep.subr.mxu0 0.0
        %471 = vmatpush1.msra.mxu0 0.0
        %472 = vmatprep.subr.mxu0 0.0
        %473 = vmatpush1.msra.mxu0 0.0
        %474 = vmatprep.subr.mxu0 0.0
        %475 = vmatpush1.msra.mxu0 0.0
        %476 = vmatprep.subr.mxu0 0.0
        %477 = vmatpush1.msra.mxu0 0.0
        %478 = vmatprep.subr.mxu0 0.0
        %479 = vmatpush1.msra.mxu0 0.0
        %480 = vmatprep.subr.mxu0 0.0
        %481 = vmatpush1.msra.mxu0 0.0
        %482 = vmatprep.subr.mxu0 0.0
        %483 = vmatpush1.msra.mxu0 0.0
        %484 = vmatprep.subr.mxu0 0.0
        %485 = vmatpush1.msra.mxu0 0.0
        %486 = vmatprep.subr.mxu0 0.0
        %487 = vmatpush1.msra.mxu0 0.0
        %488 = vmatprep.subr.mxu0 0.0
        %489 = vmatpush1.msra.mxu0 0.0
        %490 = vmatprep.subr.mxu0 0.0
        %491 = vmatpush1.msra.mxu0 0.0
        %492 = vmatprep.subr.mxu0 0.0
        %493 = vmatpush1.msra.mxu0 0.0
        %494 = vmatprep.subr.mxu0 %v458
        %495 = vmatpush1.msra.mxu0 %v456
        %496 = vmatprep.subr.mxu0 0.0
        %497 = vmatpush2.msra.mxu0 0.0
        %498 = vmatprep.subr.mxu0 0.0
        %499 = vmatpush2.msra.mxu0 0.0
        %500 = vmatprep.subr.mxu0 0.0
        %501 = vmatpush2.msra.mxu0 0.0
        %502 = vmatprep.subr.mxu0 0.0
        %503 = vmatpush2.msra.mxu0 0.0
        %504 = vmatprep.subr.mxu0 0.0
        %505 = vmatpush2.msra.mxu0 0.0
        %506 = vmatprep.subr.mxu0 0.0
        %507 = vmatpush2.msra.mxu0 0.0
        %508 = vmatprep.subr.mxu0 0.0
        %509 = vmatpush2.msra.mxu0 0.0
        %510 = vmatprep.subr.mxu0 0.0
        %511 = vmatpush2.msra.mxu0 0.0
        %512 = vmatprep.subr.mxu0 0.0
        %513 = vmatpush2.msra.mxu0 0.0
        %514 = vmatprep.subr.mxu0 0.0
        %515 = vmatpush2.msra.mxu0 0.0
        %516 = vmatprep.subr.mxu0 0.0
        %517 = vmatpush2.msra.mxu0 0.0
        %518 = vmatprep.subr.mxu0 0.0
        %519 = vmatpush2.msra.mxu0 0.0
        %520 = vmatprep.subr.mxu0 0.0
        %521 = vmatpush2.msra.mxu0 0.0
        %522 = vmatprep.subr.mxu0 0.0
        %523 = vmatpush2.msra.mxu0 0.0
        %524 = vmatprep.subr.mxu0 0.0
        %525 = vmatpush2.msra.mxu0 0.0
        %526 = vmatprep.subr.mxu0 0.0
        %527 = vmatpush2.msra.mxu0 0.0
        %528 = vmatprep.mubr.f32.mxu0 0.0
        %529 = vmatmul.mubr.f32.gmra.mxu0 %v453
        %v530 = vpop.f32.mrf.mxu0
        %v531 = vadd.f32 %v445, %v530
        %v532 = vpop.f32.mrf.mxu0
        %v533 = vadd.f32 %v445, %v532
        %534 = vdwg.mxu0
        %535 = vmatprep.subr.mxu0 0.0
        %536 = vmatpush1.msra.mxu0 0.0
        %537 = vmatprep.subr.mxu0 0.0
        %538 = vmatpush1.msra.mxu0 0.0
        %539 = vmatprep.subr.mxu0 0.0
        %540 = vmatpush1.msra.mxu0 0.0
        %541 = vmatprep.subr.mxu0 0.0
        %542 = vmatpush1.msra.mxu0 0.0
        %543 = vmatprep.subr.mxu0 0.0
        %544 = vmatpush1.msra.mxu0 0.0
        %545 = vmatprep.subr.mxu0 0.0
        %546 = vmatpush1.msra.mxu0 0.0
        %547 = vmatprep.subr.mxu0 0.0
        %548 = vmatpush1.msra.mxu0 0.0
        %549 = vmatprep.subr.mxu0 0.0
        %550 = vmatpush1.msra.mxu0 0.0
        %551 = vmatprep.subr.mxu0 0.0
        %552 = vmatpush1.msra.mxu0 0.0
        %553 = vmatprep.subr.mxu0 0.0
        %554 = vmatpush1.msra.mxu0 0.0
        %555 = vmatprep.subr.mxu0 0.0
        %556 = vmatpush1.msra.mxu0 0.0
        %557 = vmatprep.subr.mxu0 0.0
        %558 = vmatpush1.msra.mxu0 0.0
        %559 = vmatprep.subr.mxu0 0.0
        %560 = vmatpush1.msra.mxu0 0.0
        %561 = vmatprep.subr.mxu0 0.0
        %562 = vmatpush1.msra.mxu0 0.0
        %563 = vmatprep.subr.mxu0 0.0
        %564 = vmatpush1.msra.mxu0 0.0
        %565 = vmatprep.subr.mxu0 %v462
        %566 = vmatpush1.msra.mxu0 %v460
        %567 = vmatprep.subr.mxu0 0.0
        %568 = vmatpush2.msra.mxu0 0.0
        %569 = vmatprep.subr.mxu0 0.0
        %570 = vmatpush2.msra.mxu0 0.0
        %571 = vmatprep.subr.mxu0 0.0
        %572 = vmatpush2.msra.mxu0 0.0
        %573 = vmatprep.subr.mxu0 0.0
        %574 = vmatpush2.msra.mxu0 0.0
        %575 = vmatprep.subr.mxu0 0.0
        %576 = vmatpush2.msra.mxu0 0.0
        %577 = vmatprep.subr.mxu0 0.0
        %578 = vmatpush2.msra.mxu0 0.0
        %579 = vmatprep.subr.mxu0 0.0
        %580 = vmatpush2.msra.mxu0 0.0
        %581 = vmatprep.subr.mxu0 0.0
        %582 = vmatpush2.msra.mxu0 0.0
        %583 = vmatprep.subr.mxu0 0.0
        %584 = vmatpush2.msra.mxu0 0.0
        %585 = vmatprep.subr.mxu0 0.0
        %586 = vmatpush2.msra.mxu0 0.0
        %587 = vmatprep.subr.mxu0 0.0
        %588 = vmatpush2.msra.mxu0 0.0
        %589 = vmatprep.subr.mxu0 0.0
        %590 = vmatpush2.msra.mxu0 0.0
        %591 = vmatprep.subr.mxu0 0.0
        %592 = vmatpush2.msra.mxu0 0.0
        %593 = vmatprep.subr.mxu0 0.0
        %594 = vmatpush2.msra.mxu0 0.0
        %595 = vmatprep.subr.mxu0 0.0
        %596 = vmatpush2.msra.mxu0 0.0
        %597 = vmatprep.subr.mxu0 0.0
        %598 = vmatpush2.msra.mxu0 0.0
        %599 = vmatprep.mubr.f32.mxu0 0.0
        %600 = vmatmul.mubr.f32.gmra.mxu0 %v453
        %v601 = vpop.f32.mrf.mxu0
        %v602 = vadd.f32 %v445, %v601
        %v603 = vpop.f32.mrf.mxu0
        %v604 = vadd.f32 %v445, %v603
        %605 = vdwg.mxu0
        %vm606 = vcmp.gt.f32.partialorder %v531, 0.0
        %vm607 = vcmp.gt.f32.partialorder %v533, 0.0
        %vm608 = vcmp.gt.f32.partialorder %v602, 0.0
        %vm609 = vcmp.gt.f32.partialorder %v604, 0.0
        %v610 = vmul.f32 %v531, 0.1
        %v611 = vmul.f32 %v533, 0.1
        %v612 = vmul.f32 %v602, 0.1
        %v613 = vmul.f32 %v604, 0.1
        %v614 = vsel %vm606, %v531, %v610
        %v615 = vsel %vm607, %v533, %v611
        %v616 = vsel %vm608, %v602, %v612
        %v617 = vsel %vm609, %v604, %v613
        %v618 = vld [vmem:[%s271] sm:$0xff]
        %v619 = vld [vmem:[%s271 + $0x8] sm:$0xff]
        %v620 = vld [vmem:[%s271 + $0x10] sm:$0xff]
        %v621 = vld [vmem:[%s271 + $0x18] sm:$0xff]
        %v622 = vadd.f32 %v614, %v618
        %v623 = vadd.f32 %v615, %v619
        %v624 = vadd.f32 %v616, %v620
        %v625 = vadd.f32 %v617, %v621
        %v626 = vld [vmem:[%s4] sm:$0x1]
        %627 = vrot.lane.b32.xlu0 %v622, 1
        %v628 = vpop.permute.xlu0 %627
        %629 = vrot.lane.b32.xlu0 %v623, 1
        %v630 = vpop.permute.xlu0 %629
        %631 = vrot.lane.b32.xlu0 %v624, 1
        %v632 = vpop.permute.xlu0 %631
        %633 = vrot.lane.b32.xlu0 %v625, 1
        %v634 = vpop.permute.xlu0 %633
        %v635 = vsel %vm346, %v632, %v634
        %v636 = vsel %vm346, %v630, %v632
        %v637 = vsel %vm346, %v628, %v630
        %v638 = vsel %vm346, %v634, %v628
        %v639 = vsel %vm295, 1, 0
        %v640 = vsel %vm296, 1, 0
        %v641 = vsel %vm297, 1, 0
        %v642 = vsel %vm298, 1, 0
        %vm643 = vcmp.eq.s32.totalorder %v639, 1
        %vm644 = vcmp.eq.s32.totalorder %v640, 1
        %vm645 = vcmp.eq.s32.totalorder %v641, 1
        %vm646 = vcmp.eq.s32.totalorder %v642, 1
        %v647 = vsel %vm643, %v638, 0.0
        %v648 = vsel %vm644, %v637, 0.0
        %v649 = vsel %vm645, %v636, 0.0
        %v650 = vsel %vm646, %v635, 0.0
        %651 = vst [vmem:[#allocation3] sm:$0xff] %v647
        %652 = vst [vmem:[#allocation3 + $0x8] sm:$0xff] %v648
        %653 = vst [vmem:[#allocation3 + $0x10] sm:$0xff] %v649
        %654 = vst [vmem:[#allocation3 + $0x18] sm:$0xff] %v650
        %655 = vst [vmem:[#allocation3 + $0x20] sm:$0xff] %v622
        %656 = vst [vmem:[#allocation3 + $0x28] sm:$0xff] %v623
        %657 = vst [vmem:[#allocation3 + $0x30] sm:$0xff] %v624
        %658 = vst [vmem:[#allocation3 + $0x38] sm:$0xff] %v625
        %659 = vrot.lane.b32.xlu0 %v622, 127
        %v660 = vpop.permute.xlu0 %659
        %661 = vrot.lane.b32.xlu0 %v623, 127
        %v662 = vpop.permute.xlu0 %661
        %663 = vrot.lane.b32.xlu0 %v624, 127
        %v664 = vpop.permute.xlu0 %663
        %665 = vrot.lane.b32.xlu0 %v625, 127
        %v666 = vpop.permute.xlu0 %665
        %v667 = vsel %vm399, %v664, %v666
        %v668 = vsel %vm399, %v662, %v664
        %v669 = vsel %vm399, %v660, %v662
        %v670 = vsel %vm399, %v666, %v660
        %v671 = vsel %vm311, 1, 0
        %v672 = vsel %vm312, 1, 0
        %v673 = vsel %vm313, 1, 0
        %v674 = vsel %vm314, 1, 0
        %vm675 = vcmp.eq.s32.totalorder %v671, 1
        %vm676 = vcmp.eq.s32.totalorder %v672, 1
        %vm677 = vcmp.eq.s32.totalorder %v673, 1
        %vm678 = vcmp.eq.s32.totalorder %v674, 1
        %v679 = vsel %vm675, %v669, 0.0
        %v680 = vsel %vm676, %v668, 0.0
        %v681 = vsel %vm677, %v667, 0.0
        %v682 = vsel %vm678, %v670, 0.0
        %683 = vst [vmem:[#allocation3 + $0x40] sm:$0xff] %v679
        %684 = vst [vmem:[#allocation3 + $0x48] sm:$0xff] %v680
        %685 = vst [vmem:[#allocation3 + $0x50] sm:$0xff] %v681
        %686 = vst [vmem:[#allocation3 + $0x58] sm:$0xff] %v682
        %v687 = vld [vmem:[#allocation3] sm:$0xff]
        %v688 = vld [vmem:[#allocation3 + $0x8] sm:$0xff]
        %v689 = vld [vmem:[#allocation3 + $0x10] sm:$0xff]
        %v690 = vld [vmem:[#allocation3 + $0x18] sm:$0xff]
        %v691 = vld [vmem:[#allocation3 + $0x20] sm:$0xff]
        %v692 = vld [vmem:[#allocation3 + $0x28] sm:$0xff]
        %v693 = vld [vmem:[#allocation3 + $0x30] sm:$0xff]
        %v694 = vld [vmem:[#allocation3 + $0x38] sm:$0xff]
        %v695 = vld [vmem:[#allocation3 + $0x40] sm:$0xff]
        %v696 = vld [vmem:[#allocation3 + $0x48] sm:$0xff]
        %v697 = vld [vmem:[#allocation3 + $0x50] sm:$0xff]
        %v698 = vld [vmem:[#allocation3 + $0x58] sm:$0xff]
        %v699 = vld [vmem:[#allocation4] sm:$0x1]
        %701 = vset.pattern.permute.xlu0 0
        %702 = vperm.xlu0 %701, %v699
        %v703 = vpop.permute.xlu0 %702
        %v705 = vlaneseq
        %v706 = vshrl.u32 %v705, 7
        %v707 = vsub.s32 0, %v706
        %v708 = vrot.slane %v703, %v707
        %vm709 = vcmask 195584
        %v711 = vsel %vm709, %v626, 0
        %713 = vmatprep.subr.mxu0 0.0
        %714 = vmatpush1.msra.mxu0 0.0
        %715 = vmatprep.subr.mxu0 0.0
        %716 = vmatpush1.msra.mxu0 0.0
        %717 = vmatprep.subr.mxu0 0.0
        %718 = vmatpush1.msra.mxu0 0.0
        %719 = vmatprep.subr.mxu0 0.0
        %720 = vmatpush1.msra.mxu0 0.0
        %721 = vmatprep.subr.mxu0 0.0
        %722 = vmatpush1.msra.mxu0 0.0
        %723 = vmatprep.subr.mxu0 0.0
        %724 = vmatpush1.msra.mxu0 0.0
        %725 = vmatprep.subr.mxu0 0.0
        %726 = vmatpush1.msra.mxu0 0.0
        %727 = vmatprep.subr.mxu0 0.0
        %728 = vmatpush1.msra.mxu0 0.0
        %729 = vmatprep.subr.mxu0 0.0
        %730 = vmatpush1.msra.mxu0 0.0
        %731 = vmatprep.subr.mxu0 0.0
        %732 = vmatpush1.msra.mxu0 0.0
        %733 = vmatprep.subr.mxu0 0.0
        %734 = vmatpush1.msra.mxu0 0.0
        %735 = vmatprep.subr.mxu0 0.0
        %736 = vmatpush1.msra.mxu0 0.0
        %737 = vmatprep.subr.mxu0 0.0
        %738 = vmatpush1.msra.mxu0 0.0
        %739 = vmatprep.subr.mxu0 %v696
        %740 = vmatpush1.msra.mxu0 %v695
        %741 = vmatprep.subr.mxu0 %v692
        %742 = vmatpush1.msra.mxu0 %v691
        %743 = vmatprep.subr.mxu0 %v688
        %744 = vmatpush1.msra.mxu0 %v687
        %745 = vmatprep.subr.mxu0 0.0
        %746 = vmatpush2.msra.mxu0 0.0
        %747 = vmatprep.subr.mxu0 0.0
        %748 = vmatpush2.msra.mxu0 0.0
        %749 = vmatprep.subr.mxu0 0.0
        %750 = vmatpush2.msra.mxu0 0.0
        %751 = vmatprep.subr.mxu0 0.0
        %752 = vmatpush2.msra.mxu0 0.0
        %753 = vmatprep.subr.mxu0 0.0
        %754 = vmatpush2.msra.mxu0 0.0
        %755 = vmatprep.subr.mxu0 0.0
        %756 = vmatpush2.msra.mxu0 0.0
        %757 = vmatprep.subr.mxu0 0.0
        %758 = vmatpush2.msra.mxu0 0.0
        %759 = vmatprep.subr.mxu0 0.0
        %760 = vmatpush2.msra.mxu0 0.0
        %761 = vmatprep.subr.mxu0 0.0
        %762 = vmatpush2.msra.mxu0 0.0
        %763 = vmatprep.subr.mxu0 0.0
        %764 = vmatpush2.msra.mxu0 0.0
        %765 = vmatprep.subr.mxu0 0.0
        %766 = vmatpush2.msra.mxu0 0.0
        %767 = vmatprep.subr.mxu0 0.0
        %768 = vmatpush2.msra.mxu0 0.0
        %769 = vmatprep.subr.mxu0 0.0
        %770 = vmatpush2.msra.mxu0 0.0
        %771 = vmatprep.subr.mxu0 0.0
        %772 = vmatpush2.msra.mxu0 0.0
        %773 = vmatprep.subr.mxu0 0.0
        %774 = vmatpush2.msra.mxu0 0.0
        %775 = vmatprep.subr.mxu0 0.0
        %776 = vmatpush2.msra.mxu0 0.0
        %777 = vmatprep.mubr.f32.mxu0 0.0
        %778 = vmatmul.mubr.f32.gmra.mxu0 %v711
        %v779 = vpop.f32.mrf.mxu0
        %v780 = vadd.f32 %v708, %v779
        %v781 = vpop.f32.mrf.mxu0
        %v782 = vadd.f32 %v708, %v781
        %783 = vdwg.mxu0
        %784 = vmatprep.subr.mxu0 0.0
        %785 = vmatpush1.msra.mxu0 0.0
        %786 = vmatprep.subr.mxu0 0.0
        %787 = vmatpush1.msra.mxu0 0.0
        %788 = vmatprep.subr.mxu0 0.0
        %789 = vmatpush1.msra.mxu0 0.0
        %790 = vmatprep.subr.mxu0 0.0
        %791 = vmatpush1.msra.mxu0 0.0
        %792 = vmatprep.subr.mxu0 0.0
        %793 = vmatpush1.msra.mxu0 0.0
        %794 = vmatprep.subr.mxu0 0.0
        %795 = vmatpush1.msra.mxu0 0.0
        %796 = vmatprep.subr.mxu0 0.0
        %797 = vmatpush1.msra.mxu0 0.0
        %798 = vmatprep.subr.mxu0 0.0
        %799 = vmatpush1.msra.mxu0 0.0
        %800 = vmatprep.subr.mxu0 0.0
        %801 = vmatpush1.msra.mxu0 0.0
        %802 = vmatprep.subr.mxu0 0.0
        %803 = vmatpush1.msra.mxu0 0.0
        %804 = vmatprep.subr.mxu0 0.0
        %805 = vmatpush1.msra.mxu0 0.0
        %806 = vmatprep.subr.mxu0 0.0
        %807 = vmatpush1.msra.mxu0 0.0
        %808 = vmatprep.subr.mxu0 0.0
        %809 = vmatpush1.msra.mxu0 0.0
        %810 = vmatprep.subr.mxu0 %v698
        %811 = vmatpush1.msra.mxu0 %v697
        %812 = vmatprep.subr.mxu0 %v694
        %813 = vmatpush1.msra.mxu0 %v693
        %814 = vmatprep.subr.mxu0 %v690
        %815 = vmatpush1.msra.mxu0 %v689
        %816 = vmatprep.subr.mxu0 0.0
        %817 = vmatpush2.msra.mxu0 0.0
        %818 = vmatprep.subr.mxu0 0.0
        %819 = vmatpush2.msra.mxu0 0.0
        %820 = vmatprep.subr.mxu0 0.0
        %821 = vmatpush2.msra.mxu0 0.0
        %822 = vmatprep.subr.mxu0 0.0
        %823 = vmatpush2.msra.mxu0 0.0
        %824 = vmatprep.subr.mxu0 0.0
        %825 = vmatpush2.msra.mxu0 0.0
        %826 = vmatprep.subr.mxu0 0.0
        %827 = vmatpush2.msra.mxu0 0.0
        %828 = vmatprep.subr.mxu0 0.0
        %829 = vmatpush2.msra.mxu0 0.0
        %830 = vmatprep.subr.mxu0 0.0
        %831 = vmatpush2.msra.mxu0 0.0
        %832 = vmatprep.subr.mxu0 0.0
        %833 = vmatpush2.msra.mxu0 0.0
        %834 = vmatprep.subr.mxu0 0.0
        %835 = vmatpush2.msra.mxu0 0.0
        %836 = vmatprep.subr.mxu0 0.0
        %837 = vmatpush2.msra.mxu0 0.0
        %838 = vmatprep.subr.mxu0 0.0
        %839 = vmatpush2.msra.mxu0 0.0
        %840 = vmatprep.subr.mxu0 0.0
        %841 = vmatpush2.msra.mxu0 0.0
        %842 = vmatprep.subr.mxu0 0.0
        %843 = vmatpush2.msra.mxu0 0.0
        %844 = vmatprep.subr.mxu0 0.0
        %845 = vmatpush2.msra.mxu0 0.0
        %846 = vmatprep.subr.mxu0 0.0
        %847 = vmatpush2.msra.mxu0 0.0
        %848 = vmatprep.mubr.f32.mxu0 0.0
        %849 = vmatmul.mubr.f32.gmra.mxu0 %v711
        %v850 = vpop.f32.mrf.mxu0
        %v851 = vadd.f32 %v708, %v850
        %v852 = vpop.f32.mrf.mxu0
        %v853 = vadd.f32 %v708, %v852
        %854 = vdwg.mxu0
        %v859 = vcombine.low %v780, %v782
        %v860 = vcombine.low %v851, %v853
        %v862 = vunpack.c.l.s4 1966171168
        %v863 = vunpack.c.0.s8 %v862
        %v864 = vlaneseq
        %v865 = vshrl.u32 %v864, 7
        %v866 = vsub.s32 %v863, %v865
        %v867 = vrot.slane %v859, %v866
        %v869 = vunpack.c.l.s4 1966171168
        %v870 = vunpack.c.0.s8 %v869
        %v871 = vlaneseq
        %v872 = vshrl.u32 %v871, 7
        %v873 = vsub.s32 %v870, %v872
        %v874 = vrot.slane %v860, %v873
        %v875 = vcombine.low %v867, %v874
        %v877 = vunpack.c.l.s4 1966171168
        %v878 = vunpack.c.0.s8 %v877
        %v879 = vlaneseq
        %v880 = vshrl.u32 %v879, 7
        %v881 = vsub.s32 %v878, %v880
        %v882 = vrot.slane %v875, %v881
        %884 = vst.msk [vmem:[%s261] sm:$0xf] %vm387, %v882
        %s885 = sand.u32 %s166, 1
        %s886 = scalar_lea.sflag [#allocation6], %s885
        %s887 = sand.u32 %s166, 1
        %s888 = smul.addr %s887, 4
        %s889 = scalar_lea.vmem [#allocation5], %s888
        // Predicated region
        $region45: #{conv_block.1} parent=43 // pred_check
          %p890 = pneg %p176
        $region46: #{conv_block.1} parent=43 // pred_check_branch
          %892 = sbr.rel (%p890) target = $region48
        $region47: #{conv_block.1} parent=43 // pred_region
          %s893 = smul.u32 4, %s22
          %s895 = ssub.s32 64, 64
          %896 = vsyncadd %s886, %s895
          %s897 = smul.addr %s893, 16
          %s898 = scalar_lea.hbm %s6, %s897
          %s900 = sshll.u32 %s889, 4
          %s901 = int_to_ptr.vmem [resolvable:$true] %s900
          %903 = dma.vmem_to_hbm [thread:$0]  %s901, 64, %s898, %s886
        $region48: #{conv_block.1} parent=43 // pred_fallthru
          _
      $region44: #{conv_block.1} parent=5 // pred_fallthru
        _
      %p904 = scmp.le.s32.totalorder 2, %s17
      // Predicated region
      $region49: #{conv_block.1} parent=5 // pred_check
        %p905 = pneg %p904
      $region50: #{conv_block.1} parent=5 // pred_check_branch
        %907 = sbr.rel (%p905) target = $region52
      $region51: #{conv_block.1} parent=5 // pred_region
        %s908 = ssub.s32 %s17, 2
        // Predicated region
        $region53: #{conv_block.1} parent=51 // pred_check
          %p909 = pneg %p182
        $region54: #{conv_block.1} parent=51 // pred_check_branch
          %911 = sbr.rel (%p909) target = $region56
        $region55: #{conv_block.1} parent=51 // pred_region
          %s912 = sand.u32 %s167, 1
          %s913 = scalar_lea.sflag [#allocation6], %s912
          %s914 = sand.u32 %s167, 1
          %s915 = smul.addr %s914, 4
          %s916 = scalar_lea.vmem [#allocation5], %s915
          %917 = dma.done %s913, 64
        $region56: #{conv_block.1} parent=51 // pred_fallthru
          _
      $region52: #{conv_block.1} parent=5 // pred_fallthru
        _
    $region6: #{conv_block.1} parent=1 // loop_footer
      %s21 = sadd.s32 1, %s17
    $region7: #{conv_block.1} parent=1 // loop_footer_branch
      %16 = sbr.rel target = $region3
    $region8: #{conv_block.1} parent=1 // loop_exit
      _
    %918 = vsyncpa [#allocation6], 1
    %s919 = scalar_lea.sflag [#allocation6], 1
    %920 = vsyncpa %s919, 1

</llo_original>
